<compile_context>
chip_gen: v5e
topology: v5e:2x2
jax: 0.10.0
libtpu: 0.0.40
codegen_flags: <defaults>
</compile_context>

<pallas_src>
import functools

import jax
import jax.numpy as jnp
from jax.experimental import pallas as pl
from jax.experimental.pallas import tpu as pltpu


def _arcsin01(z):
    """arcsin for z in [0, 1] (Abramowitz & Stegun 4.4.46, |err| <= 2e-8)."""
    # TODO(synk): switch to jnp.arcsin once Mosaic asin lowering is confirmed
    # on all target generations; this polynomial is already f32-exact.
    p = jnp.float32(-0.0012624911)
    p = p * z + jnp.float32(0.0066700901)
    p = p * z + jnp.float32(-0.0170881256)
    p = p * z + jnp.float32(0.0308918810)
    p = p * z + jnp.float32(-0.0501743046)
    p = p * z + jnp.float32(0.0889789874)
    p = p * z + jnp.float32(-0.2145988016)
    p = p * z + jnp.float32(1.5707963050)
    return jnp.float32(1.5707963267948966) - jnp.sqrt(jnp.maximum(1.0 - z, 0.0)) * p


def _prompt_kernel(x_ref, e_ref, w_ref, o_ref, *,
                   tile_n, n_rows, n_embed, needs_mask):
    i = pl.program_id(0)

    @pl.when(i == 0)
    def _():
        o_ref[...] = jnp.zeros_like(o_ref)

    # L2 normalize via rsqrt (EUP). Matches F.normalize(eps=1e-12):
    #   x / max(||x||, eps) == x * rsqrt(max(||x||^2, eps^2))
    eps2 = 1e-24
    x = x_ref[...].astype(jnp.float32)                               # [tile_n, D]
    e = e_ref[...].astype(jnp.float32)                               # [M, D]
    xn = x * jax.lax.rsqrt(jnp.maximum(jnp.sum(x * x, axis=-1, keepdims=True), eps2))
    en = e * jax.lax.rsqrt(jnp.maximum(jnp.sum(e * e, axis=-1, keepdims=True), eps2))

    # MXU: s[n, m] = xn[n] . en[m]   (contract D on both operands, no transpose).
    # TODO(synk): for v6e/v7x throughput, cast xn/en to bf16 here (keep
    # preferred_element_type=f32); left in f32 to match the f32 reference to 1e-5.
    s = jax.lax.dot_general(
        xn, en, (((1,), (1,)), ((), ())),
        preferred_element_type=jnp.float32)                          # [tile_n, M]

    # d/2 = sqrt(2 - 2 s) / 2, clamped into arcsin's domain [0, 1].
    z = jnp.minimum(0.5 * jnp.sqrt(jnp.maximum(2.0 - 2.0 * s, 0.0)), 1.0)
    a = _arcsin01(z)
    dists = 2.0 * a * a                                              # [tile_n, M]

    if needs_mask:  # static: only emitted when N was padded up to the tile grid
        row = i * tile_n + jax.lax.broadcasted_iota(jnp.int32, dists.shape, 0)
        dists = jnp.where(row < n_rows, dists, 0.0)

    part = jnp.sum(dists, axis=1, keepdims=True)
    part = jnp.sum(part, axis=0, keepdims=True)                      # (1, 1)
    o_ref[...] += part

    @pl.when(i == pl.num_programs(0) - 1)
    def _():
        # abs(w) * sign(w) * mean == w * mean  (exact, incl. w == 0).
        o_ref[...] = o_ref[...] * (w_ref[0] * (1.0 / float(n_rows * n_embed)))


def prompt_forward(x, embed, weight, *, tile_n=256):
    """Pallas implementation of Prompt.forward. Returns a [1, 1] f32 array."""
    assert tile_n % 8 == 0
    x = jnp.asarray(x, jnp.float32)
    embed = jnp.asarray(embed, jnp.float32)
    n, d = x.shape
    m, _ = embed.shape

    # Tile over N. TILE_N=256 keeps double-buffered x tiles far under v7x's
    # 64 MiB VMEM for realistic D (f32, D=512 -> 512 KiB per buffer).
    if n <= tile_n:
        tn = -(-n // 8) * 8          # single tile, padded to a sublane multiple
    else:
        tn = tile_n
    n_pad = -(-n // tn) * tn
    if n_pad != n:
        x = jnp.pad(x, ((0, n_pad - n), (0, 0)))
    grid = (n_pad // tn,)

    w = jnp.asarray(weight, jnp.float32).reshape((1,))

    kernel = functools.partial(
        _prompt_kernel,
        tile_n=tn, n_rows=n, n_embed=m, needs_mask=(n_pad != n))

    return pl.pallas_call(
        kernel,
        out_shape=jax.ShapeDtypeStruct((1, 1), jnp.float32),
        grid_spec=pltpu.PrefetchScalarGridSpec(
            num_scalar_prefetch=0,
            grid=grid,
            in_specs=[
                pl.BlockSpec((tn, d), lambda i: (i, 0)),             # x: tiled over N
                pl.BlockSpec((m, d), lambda i: (0, 0)),              # embed: resident
                pl.BlockSpec(memory_space=pltpu.MemorySpace.SMEM),   # weight scalar
            ],
            out_specs=pl.BlockSpec((1, 1), lambda i: (0, 0)),        # resident scalar acc
        ),
        # The single grid axis reduces into the resident (1,1) output => arbitrary.
        compiler_params=pltpu.CompilerParams(
            dimension_semantics=("arbitrary",)),
    )(x, embed, w)


# Pure-JAX reference (mirrors the PyTorch forward exactly).
def prompt_reference(x, embed, weight):
    eps = 1e-12
    xn = x / jnp.maximum(jnp.linalg.norm(x, axis=-1, keepdims=True), eps)
    en = embed / jnp.maximum(jnp.linalg.norm(embed, axis=-1, keepdims=True), eps)
    dist = jnp.linalg.norm(xn[:, None, :] - en[None, :, :], axis=-1)
    dists = 2.0 * jnp.arcsin(dist / 2.0) ** 2
    dists = dists * jnp.sign(weight)
    return jnp.abs(weight) * jnp.mean(dists)


if __name__ == "__main__":
    key = jax.random.PRNGKey(0)
    k1, k2, k3, k4 = jax.random.split(key, 4)

    # Small shapes consistent with the module: N cutout embeddings, M prompt
    # embeds, feature dim D (CLIP uses D=512; kept small here).
    N, M, D = 8, 4, 32
    x = jax.random.normal(k1, (N, D), dtype=jnp.float32)       # "input"
    embed = jax.random.normal(k2, (M, D), dtype=jnp.float32)   # buffer "embed"

    out = jax.block_until_ready(prompt_forward(x, embed, 1.0))
    ref = prompt_reference(x, embed, jnp.float32(1.0))
    assert jnp.allclose(out[0, 0], ref, rtol=1e-5, atol=1e-6), (out, ref)

    # Negative weight exercises the sign/abs collapse (same shapes: no recompile).
    out_neg = jax.block_until_ready(prompt_forward(x, embed, -0.5))
    ref_neg = prompt_reference(x, embed, jnp.float32(-0.5))
    assert jnp.allclose(out_neg[0, 0], ref_neg, rtol=1e-5, atol=1e-6), (out_neg, ref_neg)

    # Larger N exercises the pipelined N-grid + padded-row masking path.
    N2, D2 = 300, 64
    x2 = jax.random.normal(k3, (N2, D2), dtype=jnp.float32)
    embed2 = jax.random.normal(k4, (M, D2), dtype=jnp.float32)
    out2 = jax.block_until_ready(prompt_forward(x2, embed2, 1.0))
    ref2 = prompt_reference(x2, embed2, jnp.float32(1.0))
    assert jnp.allclose(out2[0, 0], ref2, rtol=1e-5, atol=1e-6), (out2, ref2)

    print("KERNEL_OK")
</pallas_src>

<mosaic_0001>
module attributes {stable_mosaic.version = 11 : i64} {
  func.func @_prompt_kernel(%arg0: i32, %arg1: memref<8x32xf32, #tpu.memory_space<vmem>>, %arg2: memref<4x32xf32, #tpu.memory_space<vmem>>, %arg3: memref<1xf32, #tpu.memory_space<smem>>, %arg4: memref<1x1xf32, #tpu.memory_space<vmem>>) attributes {dimension_semantics = [#tpu.dimension_semantics<arbitrary>], iteration_bounds = array<i64: 1>, scalar_prefetch = 0 : i64, scratch_operands = 0 : i64, tpu.core_type = #tpu.core_type<tc>, window_params = [{transform_indices = @transform_0, window_bounds = array<i64: 8, 32>}, {pipeline_mode = #tpu.pipeline_mode<synchronous>, transform_indices = @transform_1, window_bounds = array<i64: 4, 32>}, {transform_indices = @transform_2, window_bounds = array<i64: 1>}, {pipeline_mode = #tpu.pipeline_mode<synchronous>, transform_indices = @transform_3, window_bounds = array<i64: 1, 1>}]} {
    %c0_i32 = arith.constant 0 : i32
    %0 = arith.cmpi eq, %arg0, %c0_i32 : i32
    %1 = arith.extui %0 : i1 to i32
    %c0_i32_0 = arith.constant 0 : i32
    %2 = arith.cmpi ne, %1, %c0_i32_0 : i32
    scf.if %2 {
      %cst_33 = arith.constant 0.000000e+00 : f32
      %76 = vector.broadcast %cst_33 : f32 to vector<1x1xf32>
      %c0_34 = arith.constant 0 : index
      %c0_35 = arith.constant 0 : index
      %77 = vector.load %arg4[%c0_34, %c0_35] : memref<1x1xf32, #tpu.memory_space<vmem>>, vector<1x1xf32>
      tpu.vector_store %arg4[%c0_34, %c0_35], %76 {strides = array<i32>} : memref<1x1xf32, #tpu.memory_space<vmem>>, vector<1x1xf32>,
    } else {
    }
    %c0 = arith.constant 0 : index
    %c0_1 = arith.constant 0 : index
    %3 = vector.load %arg1[%c0, %c0_1] : memref<8x32xf32, #tpu.memory_space<vmem>>, vector<8x32xf32>
    %c0_2 = arith.constant 0 : index
    %c0_3 = arith.constant 0 : index
    %4 = vector.load %arg2[%c0_2, %c0_3] : memref<4x32xf32, #tpu.memory_space<vmem>>, vector<4x32xf32>
    %5 = arith.mulf %3, %3 : vector<8x32xf32>
    %cst = arith.constant dense<0.000000e+00> : vector<8xf32>
    %6 = vector.multi_reduction <add>, %5, %cst [1] : vector<8x32xf32> to vector<8xf32>
    %7 = vector.shape_cast %6 : vector<8xf32> to vector<8x1xf32>
    %cst_4 = arith.constant 1.000000e-24 : f32
    %8 = vector.broadcast %cst_4 : f32 to vector<8x1xf32>
    %9 = arith.maximumf %7, %8 : vector<8x1xf32>
    %10 = math.rsqrt %9 : vector<8x1xf32>
    %11 = vector.broadcast %10 : vector<8x1xf32> to vector<8x32xf32>
    %12 = arith.mulf %3, %11 : vector<8x32xf32>
    %13 = arith.mulf %4, %4 : vector<4x32xf32>
    %cst_5 = arith.constant dense<0.000000e+00> : vector<4xf32>
    %14 = vector.multi_reduction <add>, %13, %cst_5 [1] : vector<4x32xf32> to vector<4xf32>
    %15 = vector.shape_cast %14 : vector<4xf32> to vector<4x1xf32>
    %cst_6 = arith.constant 1.000000e-24 : f32
    %16 = vector.broadcast %cst_6 : f32 to vector<4x1xf32>
    %17 = arith.maximumf %15, %16 : vector<4x1xf32>
    %18 = math.rsqrt %17 : vector<4x1xf32>
    %19 = vector.broadcast %18 : vector<4x1xf32> to vector<4x32xf32>
    %20 = arith.mulf %4, %19 : vector<4x32xf32>
    %cst_7 = arith.constant dense<0.000000e+00> : vector<8x4xf32>
    %21 = tpu.matmul %12, %20, %cst_7 {dimension_numbers = #tpu.dot_dimension_numbers<[1], [1], [0], [0], [0, 0, 1, 0], [], []>} : vector<8x32xf32>, vector<4x32xf32>, vector<8x4xf32> -> vector<8x4xf32>
    %cst_8 = arith.constant 2.000000e+00 : f32
    %22 = vector.broadcast %cst_8 : f32 to vector<8x4xf32>
    %23 = arith.mulf %22, %21 : vector<8x4xf32>
    %cst_9 = arith.constant 2.000000e+00 : f32
    %24 = vector.broadcast %cst_9 : f32 to vector<8x4xf32>
    %25 = arith.subf %24, %23 : vector<8x4xf32>
    %cst_10 = arith.constant 0.000000e+00 : f32
    %26 = vector.broadcast %cst_10 : f32 to vector<8x4xf32>
    %27 = arith.maximumf %25, %26 : vector<8x4xf32>
    %28 = math.sqrt %27 : vector<8x4xf32>
    %cst_11 = arith.constant 5.000000e-01 : f32
    %29 = vector.broadcast %cst_11 : f32 to vector<8x4xf32>
    %30 = arith.mulf %29, %28 : vector<8x4xf32>
    %cst_12 = arith.constant 1.000000e+00 : f32
    %31 = vector.broadcast %cst_12 : f32 to vector<8x4xf32>
    %32 = arith.minimumf %30, %31 : vector<8x4xf32>
    %cst_13 = arith.constant -0.0012624911 : f32
    %33 = vector.broadcast %cst_13 : f32 to vector<8x4xf32>
    %34 = arith.mulf %33, %32 : vector<8x4xf32>
    %cst_14 = arith.constant 6.670090e-03 : f32
    %35 = vector.broadcast %cst_14 : f32 to vector<8x4xf32>
    %36 = arith.addf %34, %35 : vector<8x4xf32>
    %37 = arith.mulf %36, %32 : vector<8x4xf32>
    %cst_15 = arith.constant -0.0170881264 : f32
    %38 = vector.broadcast %cst_15 : f32 to vector<8x4xf32>
    %39 = arith.addf %37, %38 : vector<8x4xf32>
    %40 = arith.mulf %39, %32 : vector<8x4xf32>
    %cst_16 = arith.constant 0.0308918804 : f32
    %41 = vector.broadcast %cst_16 : f32 to vector<8x4xf32>
    %42 = arith.addf %40, %41 : vector<8x4xf32>
    %43 = arith.mulf %42, %32 : vector<8x4xf32>
    %cst_17 = arith.constant -0.0501743034 : f32
    %44 = vector.broadcast %cst_17 : f32 to vector<8x4xf32>
    %45 = arith.addf %43, %44 : vector<8x4xf32>
    %46 = arith.mulf %45, %32 : vector<8x4xf32>
    %cst_18 = arith.constant 0.0889789909 : f32
    %47 = vector.broadcast %cst_18 : f32 to vector<8x4xf32>
    %48 = arith.addf %46, %47 : vector<8x4xf32>
    %49 = arith.mulf %48, %32 : vector<8x4xf32>
    %cst_19 = arith.constant -0.214598805 : f32
    %50 = vector.broadcast %cst_19 : f32 to vector<8x4xf32>
    %51 = arith.addf %49, %50 : vector<8x4xf32>
    %52 = arith.mulf %51, %32 : vector<8x4xf32>
    %cst_20 = arith.constant 1.57079625 : f32
    %53 = vector.broadcast %cst_20 : f32 to vector<8x4xf32>
    %54 = arith.addf %52, %53 : vector<8x4xf32>
    %cst_21 = arith.constant 1.000000e+00 : f32
    %55 = vector.broadcast %cst_21 : f32 to vector<8x4xf32>
    %56 = arith.subf %55, %32 : vector<8x4xf32>
    %cst_22 = arith.constant 0.000000e+00 : f32
    %57 = vector.broadcast %cst_22 : f32 to vector<8x4xf32>
    %58 = arith.maximumf %56, %57 : vector<8x4xf32>
    %59 = math.sqrt %58 : vector<8x4xf32>
    %60 = arith.mulf %59, %54 : vector<8x4xf32>
    %cst_23 = arith.constant 1.57079637 : f32
    %61 = vector.broadcast %cst_23 : f32 to vector<8x4xf32>
    %62 = arith.subf %61, %60 : vector<8x4xf32>
    %cst_24 = arith.constant 2.000000e+00 : f32
    %63 = vector.broadcast %cst_24 : f32 to vector<8x4xf32>
    %64 = arith.mulf %63, %62 : vector<8x4xf32>
    %65 = arith.mulf %64, %62 : vector<8x4xf32>
    %cst_25 = arith.constant dense<0.000000e+00> : vector<8xf32>
    %66 = vector.multi_reduction <add>, %65, %cst_25 [1] : vector<8x4xf32> to vector<8xf32>
    %67 = vector.shape_cast %66 : vector<8xf32> to vector<8x1xf32>
    %cst_26 = arith.constant dense<0.000000e+00> : vector<1xf32>
    %68 = vector.multi_reduction <add>, %67, %cst_26 [0] : vector<8x1xf32> to vector<1xf32>
    %69 = vector.shape_cast %68 : vector<1xf32> to vector<1x1xf32>
    %c0_27 = arith.constant 0 : index
    %c0_28 = arith.constant 0 : index
    %70 = vector.load %arg4[%c0_27, %c0_28] : memref<1x1xf32, #tpu.memory_space<vmem>>, vector<1x1xf32>
    %71 = arith.addf %70, %69 : vector<1x1xf32>
    %c0_29 = arith.constant 0 : index
    %c0_30 = arith.constant 0 : index
    %72 = vector.load %arg4[%c0_29, %c0_30] : memref<1x1xf32, #tpu.memory_space<vmem>>, vector<1x1xf32>
    tpu.vector_store %arg4[%c0_29, %c0_30], %71 {strides = array<i32>} : memref<1x1xf32, #tpu.memory_space<vmem>>, vector<1x1xf32>,
    %c0_i32_31 = arith.constant 0 : i32
    %73 = arith.cmpi eq, %arg0, %c0_i32_31 : i32
    %74 = arith.extui %73 : i1 to i32
    %c0_i32_32 = arith.constant 0 : i32
    %75 = arith.cmpi ne, %74, %c0_i32_32 : i32
    scf.if %75 {
      %c0_33 = arith.constant 0 : index
      %c0_34 = arith.constant 0 : index
      %76 = vector.load %arg4[%c0_33, %c0_34] : memref<1x1xf32, #tpu.memory_space<vmem>>, vector<1x1xf32>
      %c0_35 = arith.constant 0 : index
      %77 = memref.load %arg3[%c0_35] : memref<1xf32, #tpu.memory_space<smem>>
      %cst_36 = arith.constant 3.125000e-02 : f32
      %78 = arith.mulf %77, %cst_36 : f32
      %79 = vector.broadcast %78 : f32 to vector<1x1xf32>
      %80 = arith.mulf %76, %79 : vector<1x1xf32>
      %c0_37 = arith.constant 0 : index
      %c0_38 = arith.constant 0 : index
      %81 = vector.load %arg4[%c0_37, %c0_38] : memref<1x1xf32, #tpu.memory_space<vmem>>, vector<1x1xf32>
      tpu.vector_store %arg4[%c0_37, %c0_38], %80 {strides = array<i32>} : memref<1x1xf32, #tpu.memory_space<vmem>>, vector<1x1xf32>,
    } else {
    }
    return
  }
  func.func @transform_0(%arg0: i32) -> (i32, i32) {
    %c0_i32 = arith.constant 0 : i32
    %c0_i32_0 = arith.constant 0 : i32
    return %arg0, %c0_i32 : i32, i32
  }
  func.func @transform_1(%arg0: i32) -> (i32, i32) {
    %c0_i32 = arith.constant 0 : i32
    %c0_i32_0 = arith.constant 0 : i32
    %c0_i32_1 = arith.constant 0 : i32
    return %c0_i32, %c0_i32_0 : i32, i32
  }
  func.func @transform_2(%arg0: i32) -> i32 {
    %c0_i32 = arith.constant 0 : i32
    %c0_i32_0 = arith.constant 0 : i32
    return %c0_i32 : i32
  }
  func.func @transform_3(%arg0: i32) -> (i32, i32) {
    %c0_i32 = arith.constant 0 : i32
    %c0_i32_0 = arith.constant 0 : i32
    %c0_i32_1 = arith.constant 0 : i32
    return %c0_i32, %c0_i32_0 : i32, i32
  }
}

</mosaic_0001>

<llo_original>
// kernel: tpu_custom_call.1
$region0: #{tpu_custom_call.1}
  #allocation0 [shape = 'u32[]', space=smem, size = 0x4, offset = 0x4, fixed_abs, tag = 'smem constant byte address 0x4 - core index']
  #allocation1 [shape = 'u32[72,128]{1,0:T(1,128)}', space=vmem, size = 0x9000, scoped, tag = 'internal scratch']
  #allocation2 [shape = 'f32[1]{0:T(128)S(6)}', space=smem, size = 0x200, scoped, tag = 'scoped memory for tpu_custom_call.1']
  %s0 = inlined_call_operand.hbm [shape: f32[8,32], index: 0, kind: input, shape index: {}]
  %s1 = inlined_call_operand.hbm [shape: f32[4,32], index: 1, kind: input, shape index: {}]
  %s2 = inlined_call_operand.<no memory space> [shape: f32[1], index: 2, kind: input, shape index: {}]
  %s3 = inlined_call_operand.hbm [shape: f32[1,1], index: 3, kind: output, shape index: {}]
  %s4 = sld [smem:[#allocation0]]
  $region38: #{tpu_custom_call.1} parent=0
    _
  %s6 = ssub.s32 1, %s4
  %s7 = scalar_select 0, %s6, %s4
  %8 = sst [smem:[#allocation2]] %s2
  $region1: #{tpu_custom_call.1} parent=0
    #allocation3 [shape = 'u8[4096]{0}', space=vmem, size = 0x1000, scoped, tag = 'input window, operand 0, single buffered']
    #allocation4 [shape = 's32[1]{0}', space=sflag, size = 0x4, scoped, tag = 'scoped memory for tpu_custom_call.1']
    #allocation5 [shape = 's32[1]{0}', space=sflag, size = 0x4, scoped, tag = 'scoped memory for tpu_custom_call.1']
    #allocation6 [shape = 'u8[2048]{0}', space=vmem, size = 0x800, scoped, tag = 'input window, operand 1, single buffered']
    #allocation7 [shape = 's32[1]{0}', space=sflag, size = 0x4, scoped, tag = 'scoped memory for tpu_custom_call.1']
    #allocation8 [shape = 'u8[512]{0}', space=vmem, size = 0x400, scoped, tag = 'output window, operand 0, single buffered']
    %9 = vsyncpa [#allocation4], 0
    %10 = vsyncpa [#allocation7], 0
    %11 = vsyncpa [#allocation5], 0
    // Predicated region
    $region2: #{tpu_custom_call.1} parent=1 // pred_check
      _
    $region3: #{tpu_custom_call.1} parent=1 // pred_check_branch
      %13 = sbr.rel (0) target = $region5
    $region4: #{tpu_custom_call.1} parent=1 // pred_region
      %15 = vsyncadd [#allocation4], 0
      %s17 = sshll.u32 %s0, 4
      %s18 = int_to_ptr.hbm [resolvable:$true] %s17
      %s19 = sshll.u32 [#allocation3], 4
      %s20 = int_to_ptr.vmem [resolvable:$true] %s19
      %22 = dma.hbm_to_vmem [thread:$0]  %s18, 128, %s20, [#allocation4]
    $region5: #{tpu_custom_call.1} parent=1 // pred_fallthru
      _
    // Predicated region
    $region6: #{tpu_custom_call.1} parent=1 // pred_check
      _
    $region7: #{tpu_custom_call.1} parent=1 // pred_check_branch
      %24 = sbr.rel (0) target = $region9
    $region8: #{tpu_custom_call.1} parent=1 // pred_region
      %26 = vsyncadd [#allocation7], 0
      %s28 = sshll.u32 %s1, 4
      %s29 = int_to_ptr.hbm [resolvable:$true] %s28
      %s30 = sshll.u32 [#allocation6], 4
      %s31 = int_to_ptr.vmem [resolvable:$true] %s30
      %33 = dma.hbm_to_vmem [thread:$0]  %s29, 64, %s31, [#allocation7]
    $region9: #{tpu_custom_call.1} parent=1 // pred_fallthru
      _
    // Predicated region
    $region10: #{tpu_custom_call.1} parent=1 // pred_check
      _
    $region11: #{tpu_custom_call.1} parent=1 // pred_check_branch
      %35 = sbr.rel (0) target = $region13
    $region12: #{tpu_custom_call.1} parent=1 // pred_region
      _
    $region13: #{tpu_custom_call.1} parent=1 // pred_fallthru
      _
    // Predicated region
    $region14: #{tpu_custom_call.1} parent=1 // pred_check
      _
    $region15: #{tpu_custom_call.1} parent=1 // pred_check_branch
      %37 = sbr.rel (0) target = $region17
    $region16: #{tpu_custom_call.1} parent=1 // pred_region
      %39 = dma.done [#allocation4], 128
    $region17: #{tpu_custom_call.1} parent=1 // pred_fallthru
      _
    // Predicated region
    $region18: #{tpu_custom_call.1} parent=1 // pred_check
      _
    $region19: #{tpu_custom_call.1} parent=1 // pred_check_branch
      %41 = sbr.rel (0) target = $region21
    $region20: #{tpu_custom_call.1} parent=1 // pred_region
      %43 = dma.done [#allocation7], 64
    $region21: #{tpu_custom_call.1} parent=1 // pred_fallthru
      _
    %p44 = scmp.eq.s32.totalorder 0, 0
    // Predicated region
    $region22: #{tpu_custom_call.1} parent=1 // pred_check
      %p45 = pneg %p44
    $region23: #{tpu_custom_call.1} parent=1 // pred_check_branch
      %47 = sbr.rel (%p45) target = $region25
    $region24: #{tpu_custom_call.1} parent=1 // pred_region
      %vm48 = vcmask 0
      %49 = vst.msk [vmem:[#allocation8] sm:$0x1] %vm48, 0.0
    $region25: #{tpu_custom_call.1} parent=1 // pred_fallthru
      _
    %v50 = vld [vmem:[#allocation3] sm:$0xff]
    %v51 = vld [vmem:[#allocation6] sm:$0xf]
    %v52 = vmul.f32 %v50, %v50
    %vm53 = vcmask 261120
    %v54 = vsel %vm53, %v52, 0.0
    %55 = vadd.xlane.f32.xlu0 %v54
    %v56 = vpop.xlane.xlu0 %55
    %v57 = vmax.f32 %v56, 1e-24
    %v58 = vrsqrt.pop %v57
    %v59 = vmul.f32 %v58, %v57
    %v60 = vmul.f32 %v59, %v58
    %v61 = vmul.f32 0.5, %v60
    %v62 = vsub.f32 1.5, %v61
    %v63 = vmul.f32 %v58, %v62
    %vm64 = vweird.f32 %v57
    %vm65 = vweird.f32 %v58
    %vm66 = vmor %vm64, %vm65
    %v67 = vsel %vm66, %v58, %v63
    %v68 = vmul.f32 %v50, %v67
    %v69 = vmul.f32 %v51, %v51
    %vm70 = vcmask 257024
    %v71 = vsel %vm70, %v69, 0.0
    %72 = vadd.xlane.f32.xlu0 %v71
    %v73 = vpop.xlane.xlu0 %72
    %v74 = vmax.f32 %v73, 1e-24
    %v75 = vrsqrt.pop %v74
    %v76 = vmul.f32 %v75, %v74
    %v77 = vmul.f32 %v76, %v75
    %v78 = vmul.f32 0.5, %v77
    %v79 = vsub.f32 1.5, %v78
    %v80 = vmul.f32 %v75, %v79
    %vm81 = vweird.f32 %v74
    %vm82 = vweird.f32 %v75
    %vm83 = vmor %vm81, %vm82
    %v84 = vsel %vm83, %v75, %v80
    %v85 = vmul.f32 %v51, %v84
    %v87 = vsel %vm53, %v68, 0
    %v90 = vsel %vm53, %v85, 0
    %92 = vmatpush.xpose.msra.mxu0 0.0
    %93 = vmatpush.xpose.msra.mxu0 0.0
    %94 = vmatpush.xpose.msra.mxu0 0.0
    %95 = vmatpush.xpose.msra.mxu0 0.0
    %96 = vmatpush.xpose.msra.mxu0 0.0
    %97 = vmatpush.xpose.msra.mxu0 0.0
    %98 = vmatpush.xpose.msra.mxu0 0.0
    %99 = vmatpush.xpose.msra.mxu0 0.0
    %100 = vmatpush.xpose.msra.mxu0 0.0
    %101 = vmatpush.xpose.msra.mxu0 0.0
    %102 = vmatpush.xpose.msra.mxu0 0.0
    %103 = vmatpush.xpose.msra.mxu0 0.0
    %104 = vmatpush.xpose.msra.mxu0 0.0
    %105 = vmatpush.xpose.msra.mxu0 0.0
    %106 = vmatpush.xpose.msra.mxu0 0.0
    %107 = vmatpush.xpose.msra.mxu0 %v90
    %108 = vmatmul.f32.gmra.mxu0 %v87
    %v109 = vpop.f32.mrf.mxu0
    %v110 = vadd.f32 0.0, %v109
    %111 = vdwg.mxu0
    %v112 = vmul.f32 %v110, 2.0
    %v113 = vsub.f32 2.0, %v112
    %v114 = vmax.f32 %v113, 0.0
    %v115 = vrsqrt.pop %v114
    %v116 = vmul.f32 %v115, %v114
    %v117 = vmul.f32 %v116, %v115
    %v118 = vmul.f32 0.5, %v117
    %v119 = vsub.f32 1.5, %v118
    %v120 = vmul.f32 %v115, %v119
    %v121 = vmul.f32 %v114, %v120
    %vm122 = vcmp.eq.f32.partialorder %v114, inf
    %v123 = vsel %vm122, %v114, %v121
    %vm124 = vcmp.eq.f32.partialorder %v114, 0.0
    %v125 = vand.u32 %v114, 2147483648
    %v126 = vsel %vm124, %v125, %v123
    %v127 = vmul.f32 %v126, 0.5
    %v128 = vmin.f32 %v127, 1.0
    %v129 = vmul.f32 %v128, -0.0012624911
    %v130 = vadd.f32 %v129, 0.00667009
    %v131 = vmul.f32 %v130, %v128
    %v132 = vadd.f32 %v131, -0.017088126
    %v133 = vmul.f32 %v132, %v128
    %v134 = vadd.f32 %v133, 0.03089188
    %v135 = vmul.f32 %v134, %v128
    %v136 = vadd.f32 %v135, -0.050174303
    %v137 = vmul.f32 %v136, %v128
    %v138 = vadd.f32 %v137, 0.08897899
    %v139 = vmul.f32 %v138, %v128
    %v140 = vadd.f32 %v139, -0.2145988
    %v141 = vmul.f32 %v140, %v128
    %v142 = vadd.f32 %v141, 1.5707963
    %v143 = vsub.f32 1.0, %v128
    %v144 = vmax.f32 %v143, 0.0
    %v145 = vrsqrt.pop %v144
    %v146 = vmul.f32 %v145, %v144
    %v147 = vmul.f32 %v146, %v145
    %v148 = vmul.f32 0.5, %v147
    %v149 = vsub.f32 1.5, %v148
    %v150 = vmul.f32 %v145, %v149
    %v151 = vmul.f32 %v144, %v150
    %vm152 = vcmp.eq.f32.partialorder %v144, inf
    %v153 = vsel %vm152, %v144, %v151
    %vm154 = vcmp.eq.f32.partialorder %v144, 0.0
    %v155 = vand.u32 %v144, 2147483648
    %v156 = vsel %vm154, %v155, %v153
    %v157 = vmul.f32 %v156, %v142
    %v158 = vsub.f32 1.5707964, %v157
    %v159 = vmul.f32 %v158, 2.0
    %v160 = vmul.f32 %v159, %v158
    %vm161 = vcmask 31744
    %v162 = vsel %vm161, %v160, 0.0
    %163 = vadd.xlane.f32.xlu0 %v162
    %v164 = vpop.xlane.xlu0 %163
    %v165 = vrot.slane %v164, 4
    %v166 = vadd.f32 %v164, %v165
    %v167 = vrot.slane %v166, 2
    %v168 = vadd.f32 %v166, %v167
    %v169 = vrot.slane %v168, 1
    %v170 = vadd.f32 %v168, %v169
    %v171 = vld [vmem:[#allocation8] sm:$0x1]
    %v172 = vadd.f32 %v171, %v170
    %vm173 = vcmask 0
    %174 = vst.msk [vmem:[#allocation8] sm:$0x1] %vm173, %v172
    // Predicated region
    $region26: #{tpu_custom_call.1} parent=1 // pred_check
      %p175 = pneg %p44
    $region27: #{tpu_custom_call.1} parent=1 // pred_check_branch
      %177 = sbr.rel (%p175) target = $region29
    $region28: #{tpu_custom_call.1} parent=1 // pred_region
      %v178 = vld [vmem:[#allocation8] sm:$0x1]
      %s179 = sld [smem:[#allocation2]]
      %s180 = smul.f32 %s179, 0.03125
      %v181 = vstv %s180
      %v182 = vmul.f32 %v178, %v181
      %183 = vst.msk [vmem:[#allocation8] sm:$0x1] %vm173, %v182
    $region29: #{tpu_custom_call.1} parent=1 // pred_fallthru
      _
    // Predicated region
    $region30: #{tpu_custom_call.1} parent=1 // pred_check
      _
    $region31: #{tpu_custom_call.1} parent=1 // pred_check_branch
      %185 = sbr.rel (0) target = $region33
    $region32: #{tpu_custom_call.1} parent=1 // pred_region
      %187 = vsyncadd [#allocation5], 0
      %s189 = sshll.u32 [#allocation8], 4
      %s190 = int_to_ptr.vmem [resolvable:$true] %s189
      %s191 = sshll.u32 %s3, 4
      %s192 = int_to_ptr.hbm [resolvable:$true] %s191
      %194 = dma.vmem_to_hbm [thread:$0]  %s190, 16, %s192, [#allocation5]
    $region33: #{tpu_custom_call.1} parent=1 // pred_fallthru
      _
    // Predicated region
    $region34: #{tpu_custom_call.1} parent=1 // pred_check
      _
    $region35: #{tpu_custom_call.1} parent=1 // pred_check_branch
      %196 = sbr.rel (0) target = $region37
    $region36: #{tpu_custom_call.1} parent=1 // pred_region
      %198 = dma.done [#allocation5], 16
    $region37: #{tpu_custom_call.1} parent=1 // pred_fallthru
      _
    %199 = vsyncpa [#allocation4], 1
    %200 = vsyncpa [#allocation7], 1
    %201 = vsyncpa [#allocation5], 1

</llo_original>
